<compile_context>
chip_gen: v7x
topology: tpu7x:2x2x1
jax: 0.10.0
libtpu: 0.0.40
codegen_flags: <defaults>
</compile_context>

<pallas_src>
import math

import jax
import jax.numpy as jnp
from jax.experimental import pallas as pl
from jax.experimental.pallas import tpu as pltpu

_LANE = 128                              # TPU lane width: lane-dense, unmasked stores
_MIN_PALLAS_ELEMS = 1 << 18              # below ~256K elems a fused XLA add wins (review #7)
_TARGET_TILE_BYTES = 4 * 1024 * 1024     # ~4 MiB row tiles (f32 basis) (review #2/#3)
_PE_RESIDENT_BYTES = 4 * 1024 * 1024     # keep pe fully VMEM-resident up to this size (review #5)
_VMEM_LIMIT_BYTES = 40 * 1024 * 1024     # explicit scoped VMEM: safe on v5e/v6e/v7x (review #2/#4)


def _build_pe(max_len: int, d_model: int) -> jnp.ndarray:
    """Deterministic sinusoidal PE buffer, shape (1, max_len, d_model), float32."""
    position = jnp.arange(0, max_len, dtype=jnp.float32)[:, None]              # (max_len, 1)
    div_term = jnp.exp(
        jnp.arange(0, d_model, 2, dtype=jnp.float32) * -(math.log(10000.0) / d_model)
    )                                                                           # (d_model//2,)
    pe = jnp.zeros((max_len, d_model), dtype=jnp.float32)
    pe = pe.at[:, 0::2].set(jnp.sin(position * div_term))
    pe = pe.at[:, 1::2].set(jnp.cos(position * div_term))
    return pe[None, :, :]                                                       # (1, max_len, d_model)


def _pe_add_tiled_kernel(x_ref, pe_ref, o_ref):
    # x tile and pe tile share the (1, TR, 128) shape; add in f32, cast only on the store.
    o_ref[...] = (x_ref[...].astype(jnp.float32) + pe_ref[...]).astype(o_ref.dtype)


def _pe_add_resident_kernel(x_ref, pe_ref, o_ref):
    # pe_ref is the full (1, R_pe, 128) f32 slab: constant block index => DMA'd exactly once
    # for the whole kernel and resident in VMEM.  Slice this tile's rows in-kernel.
    tr = x_ref.shape[1]
    start = pl.multiple_of(pl.program_id(0) * tr, tr)        # TR-aligned sublane offset
    pe_tile = pe_ref[:, pl.ds(start, tr), :]
    o_ref[...] = (x_ref[...].astype(jnp.float32) + pe_tile).astype(o_ref.dtype)


def _maybe_single_buffered(block_shape, index_map, single_buffer: bool) -> pl.BlockSpec:
    """pe's block index changes only once per B inner steps; when B is large its second
    pipeline buffer is dead weight -> single-buffer it and give the VMEM back (review #6)."""
    if single_buffer:
        try:
            return pl.BlockSpec(block_shape, index_map, pipeline_mode=pl.Buffered(1))
        except (TypeError, AttributeError):
            pass
    return pl.BlockSpec(block_shape, index_map)


def positional_encoding_forward(
    x: jnp.ndarray,
    pe: jnp.ndarray,
    *,
    pe_flat: jnp.ndarray | None = None,
    force_pallas: bool = False,
    target_tile_bytes: int = _TARGET_TILE_BYTES,
    pe_resident_bytes: int = _PE_RESIDENT_BYTES,
    donate_x: bool = False,
) -> jnp.ndarray:
    """x: (B, S, D); pe: (1, max_len, D) float32; pe_flat: optional precomputed
    (1, max_len*D/128, 128) view of pe.  Returns x + pe[:, :S, :] in x.dtype."""
    B, S, D = x.shape
    max_len = pe.shape[1]
    if S > max_len:
        raise ValueError(f"sequence length {S} exceeds positional-encoding max_len {max_len}")

    L = S * D
    # Bypass: tiny inputs (launch overhead dominates) or S*D not a lane multiple
    # (would force masked partial stores) -> one fused XLA add is faster/simpler.
    if (L % _LANE != 0) or (not force_pallas and B * L < _MIN_PALLAS_ELEMS):
        return (x.astype(jnp.float32) + pe[:, :S, :]).astype(x.dtype)

    R = L // _LANE
    itemsize = jnp.dtype(x.dtype).itemsize
    sub = max(8, 32 // itemsize)          # sublane multiple: 8 (f32), 16 (bf16), 32 (int8/fp8)

    # Row-tile size budgeted against the widest stream (f32 pe tile), balanced across the
    # grid so there is no tiny remainder tile (review #8).
    row_bytes_f32 = _LANE * 4
    tr_cap = max(sub, (target_tile_bytes // row_bytes_f32) // sub * sub)
    if R <= tr_cap:
        TR, num_tiles = R, 1
    else:
        num_tiles = pl.cdiv(R, tr_cap)
        TR = pl.cdiv(pl.cdiv(R, num_tiles), sub) * sub
        num_tiles = pl.cdiv(R, TR)

    x2 = x.reshape(B, R, _LANE)
    R_pe = pe_flat.shape[1] if pe_flat is not None else -1

    # Prefer the precomputed full f32 slab (no per-call slice/cast).  NOTE: real pe rows
    # beyond R (positions > S) only ever pair with out-of-range x rows of a partial last
    # tile, whose output writeback Pallas masks -- safe by construction (review concern #2).
    resident = (
        pe_flat is not None
        and R_pe * _LANE * 4 <= pe_resident_bytes     # fits the resident VMEM budget
        and num_tiles * TR <= R_pe                    # in-kernel slice never reads OOB
    )
    if resident:
        kernel = _pe_add_resident_kernel
        pe2 = pe_flat                                                   # pure reshape; no copy
        pe_spec = pl.BlockSpec((1, R_pe, _LANE), lambda j, b: (0, 0, 0))  # fetched once, resident
    else:
        kernel = _pe_add_tiled_kernel
        use_flat = pe_flat is not None and (TR % 8 == 0 or TR == R_pe)
        pe2 = pe_flat if use_flat else pe[:, :S, :].reshape(1, R, _LANE)  # cheap: S*D*4 bytes
        pe_spec = _maybe_single_buffered(
            (1, TR, _LANE), lambda j, b: (0, j, 0), single_buffer=(B >= 8))

    call_kwargs = {}
    if donate_x:
        # No HBM-traffic win, but drops the extra (B,S,D) output allocation (review #8).
        call_kwargs["input_output_aliases"] = {0: 0}

    out2 = pl.pallas_call(
        kernel,
        out_shape=jax.ShapeDtypeStruct((B, R, _LANE), x.dtype),
        grid_spec=pltpu.PrefetchScalarGridSpec(
            num_scalar_prefetch=0,
            # Batch is the inner grid axis: pe's block index is constant across it, so a pe
            # tile (or the resident slab) is never re-DMA'd while x/out stream through.
            grid=(num_tiles, B),
            in_specs=[
                pl.BlockSpec((1, TR, _LANE), lambda j, b: (b, j, 0)),   # x
                pe_spec,                                                # pe
            ],
            out_specs=pl.BlockSpec((1, TR, _LANE), lambda j, b: (b, j, 0)),
        ),
        compiler_params=pltpu.CompilerParams(
            dimension_semantics=("parallel", "parallel"),
            vmem_limit_bytes=_VMEM_LIMIT_BYTES,
        ),
        **call_kwargs,
    )(x2, pe2)

    # Dropout(p=0) is the identity at both train and eval time.
    return out2.reshape(B, S, D)


class PositionalEncoding:
    """JAX/Pallas port of the PyTorch PositionalEncoding module (dropout default p=0)."""

    def __init__(self, d_model: int, dropout: float = 0.0, max_len: int = 512):
        # TODO(synk): dropout with p>0 (needs RNG) is not implemented; reference default p=0 == identity.
        self.d_model = d_model
        self.max_len = max_len
        self.pe = _build_pe(max_len, d_model)                    # (1, max_len, d_model) f32, built once
        # Precompute the lane-flattened view ONCE (pure reshape) so the hot path never
        # re-casts / re-packs the pe buffer (review item #1).
        if (max_len * d_model) % _LANE == 0:
            self.pe_flat = self.pe.reshape(1, (max_len * d_model) // _LANE, _LANE)
        else:
            self.pe_flat = None

    def __call__(self, x: jnp.ndarray, **kwargs) -> jnp.ndarray:
        return positional_encoding_forward(x, self.pe, pe_flat=self.pe_flat, **kwargs)


if __name__ == "__main__":
    d_model, max_len = 32, 512
    batch, seq = 2, 8

    key = jax.random.PRNGKey(0)
    k1, k2 = jax.random.split(key)

    # --- tiny f32 config: force the Pallas path (single-tile, resident-pe kernel) ---
    mod = PositionalEncoding(d_model, max_len=max_len)
    x = jax.random.normal(k1, (batch, seq, d_model), dtype=jnp.float32)
    y = jax.block_until_ready(mod(x, force_pallas=True))
    ref = x + mod.pe[:, :seq, :]
    assert y.shape == (batch, seq, d_model)
    assert jnp.allclose(y, ref, atol=1e-6), "f32 mismatch vs reference"

    # --- bf16 config with a tiny tile budget: multi-tile grid + resident-pe slicing ---
    d_model2, seq2 = 64, 256
    mod2 = PositionalEncoding(d_model2, max_len=max_len)
    x2 = jax.random.normal(k2, (batch, seq2, d_model2), dtype=jnp.bfloat16)
    ref2 = (x2.astype(jnp.float32) + mod2.pe[:, :seq2, :]).astype(jnp.bfloat16)

    y2 = jax.block_until_ready(
        positional_encoding_forward(
            x2, mod2.pe, pe_flat=mod2.pe_flat, force_pallas=True,
            target_tile_bytes=16 * 1024))
    assert y2.shape == (batch, seq2, d_model2)
    assert jnp.allclose(y2.astype(jnp.float32), ref2.astype(jnp.float32), atol=5e-2), \
        "bf16 resident-path mismatch vs reference"

    # --- same shapes, residency disabled: exercises the tiled-pe fallback kernel ---
    y3 = jax.block_until_ready(
        positional_encoding_forward(
            x2, mod2.pe, pe_flat=mod2.pe_flat, force_pallas=True,
            target_tile_bytes=16 * 1024, pe_resident_bytes=0))
    assert jnp.allclose(y3.astype(jnp.float32), ref2.astype(jnp.float32), atol=5e-2), \
        "bf16 tiled-path mismatch vs reference"

    print("KERNEL_OK")
</pallas_src>

<mosaic_0001>
module attributes {stable_mosaic.version = 11 : i64} {
  func.func @_pe_add_resident_kernel(%arg0: i32, %arg1: i32, %arg2: memref<1x2x128xf32, #tpu.memory_space<vmem>>, %arg3: memref<1x128x128xf32, #tpu.memory_space<vmem>>, %arg4: memref<1x2x128xf32, #tpu.memory_space<vmem>>) attributes {dimension_semantics = [#tpu.dimension_semantics<parallel>, #tpu.dimension_semantics<parallel>], iteration_bounds = array<i64: 1, 2>, scalar_prefetch = 0 : i64, scratch_operands = 0 : i64, tpu.core_type = #tpu.core_type<tc>, window_params = [{transform_indices = @transform_0, window_bounds = array<i64: 1, 2, 128>}, {pipeline_mode = #tpu.pipeline_mode<synchronous>, transform_indices = @transform_1, window_bounds = array<i64: 1, 128, 128>}, {transform_indices = @transform_2, window_bounds = array<i64: 1, 2, 128>}]} {
    %c2_i32 = arith.constant 2 : i32
    %0 = arith.muli %arg0, %c2_i32 : i32
    %1 = tpu.assume_multiple %0, 2 : i32
    %c0 = arith.constant 0 : index
    %2 = arith.index_cast %1 : i32 to index
    %c0_0 = arith.constant 0 : index
    %3 = vector.load %arg3[%c0, %2, %c0_0] : memref<1x128x128xf32, #tpu.memory_space<vmem>>, vector<1x2x128xf32>
    %c0_1 = arith.constant 0 : index
    %c0_2 = arith.constant 0 : index
    %c0_3 = arith.constant 0 : index
    %4 = vector.load %arg2[%c0_1, %c0_2, %c0_3] : memref<1x2x128xf32, #tpu.memory_space<vmem>>, vector<1x2x128xf32>
    %5 = arith.addf %4, %3 : vector<1x2x128xf32>
    %c0_4 = arith.constant 0 : index
    %c0_5 = arith.constant 0 : index
    %c0_6 = arith.constant 0 : index
    %6 = vector.load %arg4[%c0_4, %c0_5, %c0_6] : memref<1x2x128xf32, #tpu.memory_space<vmem>>, vector<1x2x128xf32>
    tpu.vector_store %arg4[%c0_4, %c0_5, %c0_6], %5 {strides = array<i32>} : memref<1x2x128xf32, #tpu.memory_space<vmem>>, vector<1x2x128xf32>,
    return
  }
  func.func @transform_0(%arg0: i32, %arg1: i32) -> (i32, i32, i32) {
    %c0_i32 = arith.constant 0 : i32
    %c0_i32_0 = arith.constant 0 : i32
    return %arg1, %arg0, %c0_i32 : i32, i32, i32
  }
  func.func @transform_1(%arg0: i32, %arg1: i32) -> (i32, i32, i32) {
    %c0_i32 = arith.constant 0 : i32
    %c0_i32_0 = arith.constant 0 : i32
    %c0_i32_1 = arith.constant 0 : i32
    %c0_i32_2 = arith.constant 0 : i32
    return %c0_i32, %c0_i32_0, %c0_i32_1 : i32, i32, i32
  }
  func.func @transform_2(%arg0: i32, %arg1: i32) -> (i32, i32, i32) {
    %c0_i32 = arith.constant 0 : i32
    %c0_i32_0 = arith.constant 0 : i32
    return %arg1, %arg0, %c0_i32 : i32, i32, i32
  }
}

</mosaic_0001>

<llo_original>
// kernel: tpu_custom_call.1
$region0: #{tpu_custom_call.1}
  #allocation0 [shape = 'u32[]', space=smem, size = 0x4, offset = 0x4, fixed_abs, tag = 'smem constant byte address 0x4 - core index']
  #allocation1 [shape = 'u32[144,128]{1,0:T(1,128)}', space=vmem, size = 0x12000, scoped, tag = 'internal scratch']
  %s0 = inlined_call_operand.hbm [shape: f32[2,2,128], index: 0, kind: input, shape index: {}]
  %s1 = inlined_call_operand.hbm [shape: f32[1,128,128], index: 1, kind: input, shape index: {}]
  %s2 = inlined_call_operand.hbm [shape: f32[2,2,128], index: 2, kind: output, shape index: {}]
  %s3 = sld [smem:[#allocation0]]
  $region49: #{tpu_custom_call.1} parent=0
    _
  %s5 = ssub.s32 1, %s3
  %s6 = scalar_select 0, %s5, %s3
  $region1: #{tpu_custom_call.1} parent=0
    #allocation2 [shape = 'u8[2048]{0}', space=vmem, size = 0x800, scoped, tag = 'input window, operand 0']
    #allocation3 [shape = 's32[2]{0}', space=sflag, size = 0x8, scoped, tag = 'scoped memory for tpu_custom_call.1']
    #allocation4 [shape = 's32[2]{0}', space=sflag, size = 0x8, scoped, tag = 'scoped memory for tpu_custom_call.1']
    #allocation5 [shape = 'u8[65536]{0}', space=vmem, size = 0x10000, scoped, tag = 'input window, operand 1, single buffered']
    #allocation6 [shape = 's32[1]{0}', space=sflag, size = 0x4, scoped, tag = 'scoped memory for tpu_custom_call.1']
    #allocation7 [shape = 'u8[2048]{0}', space=vmem, size = 0x800, scoped, tag = 'output window, operand 0']
    %7 = vsyncpa [#allocation3], 0
    %s8 = scalar_lea.sflag [#allocation3], 1
    %9 = vsyncpa %s8, 0
    %10 = vsyncpa [#allocation6], 0
    %11 = vsyncpa [#allocation4], 0
    %s12 = scalar_lea.sflag [#allocation4], 1
    %13 = vsyncpa %s12, 0
    loop: start=0, step=1, limit=4
    $region2: #{tpu_custom_call.1} parent=1 // loop_pre_header
      _
    $region3: #{tpu_custom_call.1} parent=1 // loop_header
      %s15 = sphi 0, %s19
      %p16 = scmp.ge.s32.totalorder %s15, 4
      %s22 = sphi 0, %s34
      %s23 = sphi 0, %s30
      %s24 = sphi 0, %s22
      %s25 = sphi 0, %s23
      %s26 = sphi 0, %s24
      %s27 = sphi 0, %s25
      %s39 = sphi 0, %s41
      %s42 = sphi 0, %s39
      %s43 = sphi 0, %s42
      %s59 = sphi 0, %s43
      %s63 = sphi 0, %s63
      %s65 = sphi 0, %s63
      %s66 = sphi 0, %s65
      %s80 = sphi 0, %s66
      %s88 = sphi 0, %s90
      %s91 = sphi 0, %s88
      %s92 = sphi 0, %s91
      %s108 = sphi 0, %s92
    $region4: #{tpu_custom_call.1} parent=1 // loop_header_branch
      %18 = sbr.rel (%p16) target = $region8
    $region5: #{tpu_custom_call.1} parent=1 // loop_body
      %s20 = ssub.s32 %s15, 1
      %s21 = ssub.s32 %s15, 2
      %s28 = sadd.s32 1, %s23
      %p29 = scmp.ge.s32.totalorder %s28, 2
      %s30 = scalar_select %p29, 0, %s28
      %s31 = sadd.s32 1, %s22
      %s32 = scalar_select %p29, %s31, %s22
      %p33 = scmp.ge.s32.totalorder %s32, 1
      %s34 = scalar_select %p33, 0, %s32
      %s35 = ssub.s32 %s23, %s30
      %s36 = ssub.s32 %s22, %s34
      %s37 = sor.u32 %s35, %s36
      %p38 = scmp.eq.s32.totalorder %s37, 0
      %s40 = sadd.s32 %s39, 1
      %s41 = scalar_select %p38, %s39, %s40
      %p44 = pneg %p38
      %p45 = scmp.eq.s32.totalorder %s15, 1
      %p46 = por %p44, %p45
      %p47 = scmp.ne.s32.totalorder %s39, %s42
      %p48 = scmp.eq.s32.totalorder %s15, 0
      %p49 = por %p47, %p48
      %p50 = scmp.ne.s32.totalorder %s39, %s42
      %p51 = scmp.eq.s32.totalorder %s20, 1
      %p52 = por %p50, %p51
      %p53 = scmp.ne.s32.totalorder %s42, %s43
      %p54 = scmp.eq.s32.totalorder %s20, 0
      %p55 = por %p53, %p54
      %p56 = scmp.ne.s32.totalorder %s42, %s43
      %p57 = scmp.eq.s32.totalorder %s21, 1
      %p58 = por %p56, %p57
      %p60 = scmp.ne.s32.totalorder %s43, %s59
      %p61 = scmp.eq.s32.totalorder %s21, 0
      %p62 = por %p60, %p61
      %s64 = sadd.s32 %s63, 1
      %p67 = scmp.eq.s32.totalorder %s15, 1
      %p68 = scmp.ne.s32.totalorder %s63, %s65
      %p69 = scmp.eq.s32.totalorder %s15, 0
      %p70 = por %p68, %p69
      %p71 = scmp.ne.s32.totalorder %s63, %s65
      %p72 = scmp.eq.s32.totalorder %s20, 1
      %p73 = por %p71, %p72
      %p74 = scmp.ne.s32.totalorder %s65, %s66
      %p75 = scmp.eq.s32.totalorder %s20, 0
      %p76 = por %p74, %p75
      %p77 = scmp.ne.s32.totalorder %s65, %s66
      %p78 = scmp.eq.s32.totalorder %s21, 1
      %p79 = por %p77, %p78
      %p81 = scmp.ne.s32.totalorder %s66, %s80
      %p82 = scmp.eq.s32.totalorder %s21, 0
      %p83 = por %p81, %p82
      %s84 = ssub.s32 %s23, %s30
      %s85 = ssub.s32 %s22, %s34
      %s86 = sor.u32 %s84, %s85
      %p87 = scmp.eq.s32.totalorder %s86, 0
      %s89 = sadd.s32 %s88, 1
      %s90 = scalar_select %p87, %s88, %s89
      %p93 = pneg %p87
      %p94 = scmp.eq.s32.totalorder %s15, 1
      %p95 = por %p93, %p94
      %p96 = scmp.ne.s32.totalorder %s88, %s91
      %p97 = scmp.eq.s32.totalorder %s15, 0
      %p98 = por %p96, %p97
      %p99 = scmp.ne.s32.totalorder %s88, %s91
      %p100 = scmp.eq.s32.totalorder %s20, 1
      %p101 = por %p99, %p100
      %p102 = scmp.ne.s32.totalorder %s91, %s92
      %p103 = scmp.eq.s32.totalorder %s20, 0
      %p104 = por %p102, %p103
      %p105 = scmp.ne.s32.totalorder %s91, %s92
      %p106 = scmp.eq.s32.totalorder %s21, 1
      %p107 = por %p105, %p106
      %p109 = scmp.ne.s32.totalorder %s92, %s108
      %p110 = scmp.eq.s32.totalorder %s21, 0
      %p111 = por %p109, %p110
      %p112 = scmp.le.s32.totalorder 1, %s15
      %p113 = scmp.lt.s32.totalorder %s15, 3
      %p114 = pnand %p112, %p113
      %p115 = pneg %p114
      // Predicated region
      $region9: #{tpu_custom_call.1} parent=5 // pred_check
        _
      $region10: #{tpu_custom_call.1} parent=5 // pred_check_branch
        %117 = sbr.rel (%p114) target = $region12
      $region11: #{tpu_custom_call.1} parent=5 // pred_region
        %s118 = ssub.s32 %s15, 1
        // Predicated region
        $region13: #{tpu_custom_call.1} parent=11 // pred_check
          %p119 = pneg %p76
        $region14: #{tpu_custom_call.1} parent=11 // pred_check_branch
          %121 = sbr.rel (%p119) target = $region16
        $region15: #{tpu_custom_call.1} parent=11 // pred_region
          %s123 = ssub.s32 2048, 2048
          %124 = vsyncadd [#allocation6], %s123
          %s125 = sshll.u32 [#allocation5], 4
          %s126 = int_to_ptr.vmem [resolvable:$true] %s125
          %131 = dma.hbm_to_vmem [thread:$0]  %s1, 2048, %s126, [#allocation6], 128, 128, 8
        $region16: #{tpu_custom_call.1} parent=11 // pred_fallthru
          _
      $region12: #{tpu_custom_call.1} parent=5 // pred_fallthru
        _
      %p132 = scmp.lt.s32.totalorder %s15, 2
      // Predicated region
      $region17: #{tpu_custom_call.1} parent=5 // pred_check
        %p133 = pneg %p132
      $region18: #{tpu_custom_call.1} parent=5 // pred_check_branch
        %135 = sbr.rel (%p133) target = $region20
      $region19: #{tpu_custom_call.1} parent=5 // pred_region
        // Predicated region
        $region21: #{tpu_custom_call.1} parent=19 // pred_check
          %p136 = pneg %p49
        $region22: #{tpu_custom_call.1} parent=19 // pred_check_branch
          %138 = sbr.rel (%p136) target = $region24
        $region23: #{tpu_custom_call.1} parent=19 // pred_region
          %s139 = sand.u32 %s39, 1
          %s140 = scalar_lea.sflag [#allocation3], %s139
          %s141 = sand.u32 %s39, 1
          %s142 = smul.addr %s141, 2
          %s143 = scalar_lea.vmem [#allocation2], %s142
          %s145 = ssub.s32 32, 32
          %146 = vsyncadd %s140, %s145
          %s147 = sadd.s32 %s22, %s23
          %s148 = smul.addr %s147, 32
          %s149 = scalar_lea.hbm %s0, %s148
          %s151 = sshll.u32 %s143, 4
          %s152 = int_to_ptr.vmem [resolvable:$true] %s151
          %154 = dma.hbm_to_vmem [thread:$0]  %s149, 32, %s152, %s140
        $region24: #{tpu_custom_call.1} parent=19 // pred_fallthru
          _
      $region20: #{tpu_custom_call.1} parent=5 // pred_fallthru
        _
      %p155 = scmp.le.s32.totalorder 1, %s15
      %p156 = scmp.lt.s32.totalorder %s15, 3
      %p157 = pnand %p155, %p156
      %p158 = pneg %p157
      // Predicated region
      $region25: #{tpu_custom_call.1} parent=5 // pred_check
        _
      $region26: #{tpu_custom_call.1} parent=5 // pred_check_branch
        %160 = sbr.rel (%p157) target = $region28
      $region27: #{tpu_custom_call.1} parent=5 // pred_region
        %s161 = ssub.s32 %s15, 1
        %s162 = sand.u32 %s42, 1
        %s163 = scalar_lea.sflag [#allocation3], %s162
        %s164 = sand.u32 %s42, 1
        %s165 = smul.addr %s164, 2
        %s166 = scalar_lea.vmem [#allocation2], %s165
        // Predicated region
        $region29: #{tpu_custom_call.1} parent=27 // pred_check
          %p167 = pneg %p55
        $region30: #{tpu_custom_call.1} parent=27 // pred_check_branch
          %169 = sbr.rel (%p167) target = $region32
        $region31: #{tpu_custom_call.1} parent=27 // pred_region
          %170 = dma.done %s163, 32
        $region32: #{tpu_custom_call.1} parent=27 // pred_fallthru
          _
        // Predicated region
        $region33: #{tpu_custom_call.1} parent=27 // pred_check
          %p171 = pneg %p76
        $region34: #{tpu_custom_call.1} parent=27 // pred_check_branch
          %173 = sbr.rel (%p171) target = $region36
        $region35: #{tpu_custom_call.1} parent=27 // pred_region
          %174 = dma.done [#allocation6], 2048
        $region36: #{tpu_custom_call.1} parent=27 // pred_fallthru
          _
        %s175 = sand.u32 %s42, 1
        %s176 = scalar_lea.sflag [#allocation3], %s175
        %s177 = sand.u32 %s42, 1
        %s178 = smul.addr %s177, 2
        %s179 = scalar_lea.vmem [#allocation2], %s178
        %p180 = pneg %p55
        %p181 = pneg %p52
        %p182 = pneg %p76
        %p183 = pneg %p73
        %p184 = pneg %p104
        %p185 = pneg %p101
        %s186 = sand.u32 %s91, 1
        %s187 = scalar_lea.sflag [#allocation4], %s186
        %s188 = sand.u32 %s91, 1
        %s189 = smul.addr %s188, 2
        %s190 = scalar_lea.vmem [#allocation7], %s189
        %s191 = smul.u32 %s24, 2
        %s192 = scalar_lea.vmem [#allocation5], %s191
        %v193 = vld [vmem:[%s192] sm:$0x3]
        %v194 = vld [vmem:[%s166] sm:$0x3]
        %v195 = vadd.f32 %v194, %v193
        %196 = vst [vmem:[%s190] sm:$0x3] %v195
        %s197 = sand.u32 %s91, 1
        %s198 = scalar_lea.sflag [#allocation4], %s197
        %s199 = sand.u32 %s91, 1
        %s200 = smul.addr %s199, 2
        %s201 = scalar_lea.vmem [#allocation7], %s200
        // Predicated region
        $region37: #{tpu_custom_call.1} parent=27 // pred_check
          %p202 = pneg %p101
        $region38: #{tpu_custom_call.1} parent=27 // pred_check_branch
          %204 = sbr.rel (%p202) target = $region40
        $region39: #{tpu_custom_call.1} parent=27 // pred_region
          %s206 = ssub.s32 32, 32
          %207 = vsyncadd %s198, %s206
          %s208 = sadd.s32 %s24, %s25
          %s209 = smul.addr %s208, 32
          %s210 = scalar_lea.hbm %s2, %s209
          %s212 = sshll.u32 %s201, 4
          %s213 = int_to_ptr.vmem [resolvable:$true] %s212
          %215 = dma.vmem_to_hbm [thread:$0]  %s213, 32, %s210, %s198
        $region40: #{tpu_custom_call.1} parent=27 // pred_fallthru
          _
      $region28: #{tpu_custom_call.1} parent=5 // pred_fallthru
        _
      %p216 = scmp.le.s32.totalorder 2, %s15
      // Predicated region
      $region41: #{tpu_custom_call.1} parent=5 // pred_check
        %p217 = pneg %p216
      $region42: #{tpu_custom_call.1} parent=5 // pred_check_branch
        %219 = sbr.rel (%p217) target = $region44
      $region43: #{tpu_custom_call.1} parent=5 // pred_region
        %s220 = ssub.s32 %s15, 2
        // Predicated region
        $region45: #{tpu_custom_call.1} parent=43 // pred_check
          %p221 = pneg %p107
        $region46: #{tpu_custom_call.1} parent=43 // pred_check_branch
          %223 = sbr.rel (%p221) target = $region48
        $region47: #{tpu_custom_call.1} parent=43 // pred_region
          %s224 = sand.u32 %s92, 1
          %s225 = scalar_lea.sflag [#allocation4], %s224
          %s226 = sand.u32 %s92, 1
          %s227 = smul.addr %s226, 2
          %s228 = scalar_lea.vmem [#allocation7], %s227
          %229 = dma.done %s225, 32
        $region48: #{tpu_custom_call.1} parent=43 // pred_fallthru
          _
      $region44: #{tpu_custom_call.1} parent=5 // pred_fallthru
        _
    $region6: #{tpu_custom_call.1} parent=1 // loop_footer
      %s19 = sadd.s32 1, %s15
    $region7: #{tpu_custom_call.1} parent=1 // loop_footer_branch
      %14 = sbr.rel target = $region3
    $region8: #{tpu_custom_call.1} parent=1 // loop_exit
      _
    %230 = vsyncpa [#allocation3], 1
    %s231 = scalar_lea.sflag [#allocation3], 1
    %232 = vsyncpa %s231, 1
    %233 = vsyncpa [#allocation6], 1
    %234 = vsyncpa [#allocation4], 1
    %s235 = scalar_lea.sflag [#allocation4], 1
    %236 = vsyncpa %s235, 1

</llo_original>
